<compile_context>
chip_gen: v6e
topology: v6e:2x2x1
jax: 0.10.0
libtpu: 0.0.40
codegen_flags: <defaults>
</compile_context>

<pallas_src>
import functools
import math

import jax
import jax.numpy as jnp
from jax.experimental import pallas as pl
from jax.experimental.pallas import tpu as pltpu

_LANE = 128          # vreg lane width (last dim)
_SUBLANE_BF16 = 16   # sublane pack for bf16 tiles (f32 would be 8)
_MAX_BM = 512        # max batch-tile rows (review: 128 is too small to hit roofline)


def _round_up(x: int, m: int) -> int:
    return ((x + m - 1) // m) * m


# ----------------------------------------------------------------------------- kernel
def _fused_mlp_kernel(x_ref, *refs, num_layers: int):
    """refs = (w0, b0, w1, b1, ..., w_{L-1}, b_{L-1}, o_ref).
    Chains dot (bf16 in, f32 acc) + bias + tanh for the whole MLP on one
    (BM, *) batch tile; intermediates never leave on-chip memory."""
    o_ref = refs[-1]
    h = x_ref[...]                                        # bf16 (BM, IN)
    for i in range(num_layers):
        w = refs[2 * i][...]                              # bf16 (K_i, N_i_pad)
        b = refs[2 * i + 1][...]                          # f32  (1,  N_i_pad)
        acc = jnp.dot(h, w, preferred_element_type=jnp.float32) + b
        if i < num_layers - 1:                            # Tanh after all but last layer
            h = jnp.tanh(acc).astype(jnp.bfloat16)        # bf16 again for next MXU pass
        else:
            o_ref[...] = acc.astype(o_ref.dtype)


# ----------------------------------------------------------------------------- params
def init_mlp_params(key, sizes, dtype=jnp.float32):
    """Deterministic init mimicking nn.Linear's default (uniform +-1/sqrt(fan_in))."""
    params = []
    for i in range(len(sizes) - 1):
        fan_in, fan_out = sizes[i], sizes[i + 1]
        key, kw, kb = jax.random.split(key, 3)
        bound = 1.0 / math.sqrt(fan_in)
        w = jax.random.uniform(kw, (fan_in, fan_out), dtype, minval=-bound, maxval=bound)
        b = jax.random.uniform(kb, (fan_out,), dtype, minval=-bound, maxval=bound)
        params.append((w, b))
    return params


def prepare_mlp_params(params):
    """One-time param prep:
      * first layer keeps its true fan_in (x streams unpadded),
      * every fan_out (and therefore every subsequent fan_in) is padded to a
        128-multiple so all in-kernel lane ops and the output store are
        lane-dense,
      * weights -> bf16 (MXU native rate on v5e/v6e/v7x, half the VMEM/DMA),
        biases stay f32 (negligible bytes, exact add).
    Zero padding keeps the math exact through the whole chain (tanh(0) == 0).

    # TODO(synk): for production-sized MLPs whose bf16 weights exceed ~40 MiB,
    # keep weights in HBM (memory_space=pl.ANY) and stream K/N blocks per layer
    # with pltpu.emit_pipeline instead of forcing full VMEM residency
    # (v7x has only 64 MiB VMEM per TensorCore).
    """
    prepared = []
    for li, (w, b) in enumerate(params):
        fi, fo = w.shape
        fi_p = fi if li == 0 else _round_up(fi, _LANE)   # hidden fan_in == prev padded fan_out
        fo_p = _round_up(fo, _LANE)
        w_p = (jnp.zeros((fi_p, fo_p), jnp.float32)
               .at[:fi, :fo].set(w.astype(jnp.float32))
               .astype(jnp.bfloat16))
        b_p = jnp.zeros((1, fo_p), jnp.float32).at[0, :fo].set(b.astype(jnp.float32))
        prepared.append((w_p, b_p))
    return prepared


# ----------------------------------------------------------------------------- helpers
def _choose_batch_tiling(B: int):
    """Pick (BM, B_p): sublane-aligned bf16 tiles, BM capped at 512 rows, and at
    least 2 grid steps whenever B > 16 so the 'parallel' axis can shard across
    v7x's two TensorCores (harmless on v5e/v6e)."""
    if B <= _SUBLANE_BF16:
        return _SUBLANE_BF16, _SUBLANE_BF16
    B_p = _round_up(B, 2 * _SUBLANE_BF16)
    BM = min(_MAX_BM, B_p // 2)
    BM = max(_SUBLANE_BF16, (BM // _SUBLANE_BF16) * _SUBLANE_BF16)
    B_p = _round_up(B_p, BM)
    return BM, B_p


def _vmem_capacity_bytes() -> int:
    try:
        return int(pltpu.get_tpu_info().vmem_capacity_bytes)
    except Exception:
        return 64 << 20   # conservative fallback: v7x per-TensorCore VMEM


# ----------------------------------------------------------------------------- wrapper
def mlp_forward_fused(x: jax.Array, padded_params, out_features: int) -> jax.Array:
    """Single fused pallas_call for the whole MLP. Batch tiled on a parallel grid axis."""
    B, IN = x.shape
    assert padded_params[0][0].shape[0] == IN, "first-layer fan_in must match x features"
    OUT_p = padded_params[-1][0].shape[1]
    num_layers = len(padded_params)

    BM, B_p = _choose_batch_tiling(B)
    grid_m = B_p // BM

    # Stream activations as bf16; pad rows only if the batch tiling needs it
    # (no feature padding -> no 4x-inflated HBM copy of x).
    x_bf = x.astype(jnp.bfloat16)
    x_in = x_bf if B_p == B else jnp.zeros((B_p, IN), jnp.bfloat16).at[:B, :].set(x_bf)

    flat_params = [t for wb in padded_params for t in wb]

    # Advisory cost estimate (padded shapes = what the MXU actually does).
    flops = 2 * B_p * sum(w.shape[0] * w.shape[1] for w, _ in padded_params)
    transcendentals = B_p * sum(w.shape[1] for w, _ in padded_params[:-1])
    param_bytes = sum(w.size * w.dtype.itemsize + b.size * b.dtype.itemsize
                      for w, b in padded_params)
    bytes_accessed = (x_in.size * x_in.dtype.itemsize + param_bytes + B_p * OUT_p * 4)
    cost = pl.CostEstimate(flops=flops, transcendentals=transcendentals,
                           bytes_accessed=bytes_accessed)

    kernel = functools.partial(_fused_mlp_kernel, num_layers=num_layers)
    out_shape = jax.ShapeDtypeStruct((B_p, OUT_p), jnp.float32)
    vmem_cap = _vmem_capacity_bytes()

    def run(single_buffer_weights: bool):
        in_specs = [pl.BlockSpec((BM, IN), lambda i: (i, 0))]
        for w_p, b_p in padded_params:
            if single_buffer_weights:
                # Grid-invariant params: no double-buffering needed.
                in_specs.append(pl.BlockSpec(w_p.shape, lambda i: (0, 0),
                                             pipeline_mode=pl.Buffered(1)))
                in_specs.append(pl.BlockSpec(b_p.shape, lambda i: (0, 0),
                                             pipeline_mode=pl.Buffered(1)))
            else:
                in_specs.append(pl.BlockSpec(w_p.shape, lambda i: (0, 0)))
                in_specs.append(pl.BlockSpec(b_p.shape, lambda i: (0, 0)))
        out_specs = pl.BlockSpec((BM, OUT_p), lambda i: (i, 0))

        # VMEM budget: params (single- or double-buffered) + double-buffered x/out
        # tiles + f32 intermediate-activation temporaries, with 1.5x headroom,
        # capped generation-aware (v7x: 64 MiB/TC, v5e/v6e: 128 MiB).
        wbuf = 1 if single_buffer_weights else 2
        x_tile = BM * IN * 2
        out_tile = BM * OUT_p * 4
        inter = sum(2 * BM * w.shape[1] * 4 for w, _ in padded_params)
        budget = int(1.5 * (wbuf * param_bytes + 2 * (x_tile + out_tile) + inter))
        vmem_limit = int(min(int(0.7 * vmem_cap), max(budget, 8 << 20)))

        return pl.pallas_call(
            kernel,
            out_shape=out_shape,
            grid_spec=pltpu.PrefetchScalarGridSpec(
                num_scalar_prefetch=0,
                grid=(grid_m,),
                in_specs=in_specs,
                out_specs=out_specs,
            ),
            compiler_params=pltpu.CompilerParams(
                dimension_semantics=("parallel",),
                vmem_limit_bytes=vmem_limit,
            ),
            cost_estimate=cost,
        )(x_in, *flat_params)

    try:
        out_p = run(True)
    except Exception:
        # Runtime rejected Buffered(1); fall back to default double-buffering.
        out_p = run(False)

    # TODO(synk): on v5e, benchmark a masked OUT-wide store against this
    # lane-dense 128-wide padded store + external slice (crossover is
    # generation dependent).
    return out_p[:B, :out_features]


# ----------------------------------------------------------------------------- reference
def mlp_reference(x: jax.Array, params) -> jax.Array:
    n = len(params)
    for i, (w, b) in enumerate(params):
        x = x @ w + b
        if i < n - 1:
            x = jnp.tanh(x)
    return x


# ----------------------------------------------------------------------------- main
if __name__ == "__main__":
    key = jax.random.PRNGKey(0)
    sizes = (32, 64, 48, 16)   # MLP(sizes): Linear(32,64) Tanh Linear(64,48) Tanh Linear(48,16)

    k_x, k_p, k_x2 = jax.random.split(key, 3)
    params = init_mlp_params(k_p, sizes)
    padded_params = prepare_mlp_params(params)

    # Small-batch path (single 16-row tile, grid=(1,)).
    batch = 8
    x = jax.random.normal(k_x, (batch, sizes[0]), dtype=jnp.float32)
    out = jax.block_until_ready(mlp_forward_fused(x, padded_params, sizes[-1]))
    ref = mlp_reference(x, params)
    assert out.shape == (batch, sizes[-1])
    # bf16 weights/activations (f32 accumulation) -> loosened tolerance.
    assert jnp.allclose(out, ref, atol=2e-2, rtol=2e-2), "mismatch vs reference (batch=8)"

    # Larger batch: exercises grid_m >= 2 (two 128-row tiles on the parallel axis).
    batch2 = 256
    x2 = jax.random.normal(k_x2, (batch2, sizes[0]), dtype=jnp.float32)
    out2 = jax.block_until_ready(mlp_forward_fused(x2, padded_params, sizes[-1]))
    ref2 = mlp_reference(x2, params)
    assert out2.shape == (batch2, sizes[-1])
    assert jnp.allclose(out2, ref2, atol=2e-2, rtol=2e-2), "mismatch vs reference (batch=256)"

    print("KERNEL_OK")
</pallas_src>

<mosaic_0001>
module attributes {stable_mosaic.version = 11 : i64} {
  func.func @_fused_mlp_kernel(%arg0: i32, %arg1: memref<16x32xbf16, #tpu.memory_space<vmem>>, %arg2: memref<32x128xbf16, #tpu.memory_space<vmem>>, %arg3: memref<1x128xf32, #tpu.memory_space<vmem>>, %arg4: memref<128x128xbf16, #tpu.memory_space<vmem>>, %arg5: memref<1x128xf32, #tpu.memory_space<vmem>>, %arg6: memref<128x128xbf16, #tpu.memory_space<vmem>>, %arg7: memref<1x128xf32, #tpu.memory_space<vmem>>, %arg8: memref<16x128xf32, #tpu.memory_space<vmem>>) attributes {dimension_semantics = [#tpu.dimension_semantics<parallel>], iteration_bounds = array<i64: 1>, scalar_prefetch = 0 : i64, scratch_operands = 0 : i64, tpu.core_type = #tpu.core_type<tc>, window_params = [{transform_indices = @transform_0, window_bounds = array<i64: 16, 32>}, {pipeline_mode = #tpu.pipeline_mode<synchronous>, transform_indices = @transform_1, window_bounds = array<i64: 32, 128>}, {pipeline_mode = #tpu.pipeline_mode<synchronous>, transform_indices = @transform_2, window_bounds = array<i64: 1, 128>}, {pipeline_mode = #tpu.pipeline_mode<synchronous>, transform_indices = @transform_3, window_bounds = array<i64: 128, 128>}, {pipeline_mode = #tpu.pipeline_mode<synchronous>, transform_indices = @transform_4, window_bounds = array<i64: 1, 128>}, {pipeline_mode = #tpu.pipeline_mode<synchronous>, transform_indices = @transform_5, window_bounds = array<i64: 128, 128>}, {pipeline_mode = #tpu.pipeline_mode<synchronous>, transform_indices = @transform_6, window_bounds = array<i64: 1, 128>}, {transform_indices = @transform_7, window_bounds = array<i64: 16, 128>}]} {
    %c0 = arith.constant 0 : index
    %c0_0 = arith.constant 0 : index
    %0 = vector.load %arg1[%c0, %c0_0] : memref<16x32xbf16, #tpu.memory_space<vmem>>, vector<16x32xbf16>
    %c0_1 = arith.constant 0 : index
    %c0_2 = arith.constant 0 : index
    %1 = vector.load %arg2[%c0_1, %c0_2] : memref<32x128xbf16, #tpu.memory_space<vmem>>, vector<32x128xbf16>
    %c0_3 = arith.constant 0 : index
    %c0_4 = arith.constant 0 : index
    %2 = vector.load %arg3[%c0_3, %c0_4] : memref<1x128xf32, #tpu.memory_space<vmem>>, vector<1x128xf32>
    %cst = arith.constant dense<0.000000e+00> : vector<16x128xf32>
    %3 = tpu.matmul %0, %1, %cst {dimension_numbers = #tpu.dot_dimension_numbers<[1], [0], [0], [1], [0, 0, 1, 1], [], []>} : vector<16x32xbf16>, vector<32x128xbf16>, vector<16x128xf32> -> vector<16x128xf32>
    %4 = vector.broadcast %2 : vector<1x128xf32> to vector<16x128xf32>
    %5 = arith.addf %3, %4 : vector<16x128xf32>
    %6 = math.tanh %5 : vector<16x128xf32>
    %7 = arith.truncf %6 : vector<16x128xf32> to vector<16x128xbf16>
    %c0_5 = arith.constant 0 : index
    %c0_6 = arith.constant 0 : index
    %8 = vector.load %arg4[%c0_5, %c0_6] : memref<128x128xbf16, #tpu.memory_space<vmem>>, vector<128x128xbf16>
    %c0_7 = arith.constant 0 : index
    %c0_8 = arith.constant 0 : index
    %9 = vector.load %arg5[%c0_7, %c0_8] : memref<1x128xf32, #tpu.memory_space<vmem>>, vector<1x128xf32>
    %cst_9 = arith.constant dense<0.000000e+00> : vector<16x128xf32>
    %10 = tpu.matmul %7, %8, %cst_9 {dimension_numbers = #tpu.dot_dimension_numbers<[1], [0], [0], [1], [0, 0, 1, 1], [], []>} : vector<16x128xbf16>, vector<128x128xbf16>, vector<16x128xf32> -> vector<16x128xf32>
    %11 = vector.broadcast %9 : vector<1x128xf32> to vector<16x128xf32>
    %12 = arith.addf %10, %11 : vector<16x128xf32>
    %13 = math.tanh %12 : vector<16x128xf32>
    %14 = arith.truncf %13 : vector<16x128xf32> to vector<16x128xbf16>
    %c0_10 = arith.constant 0 : index
    %c0_11 = arith.constant 0 : index
    %15 = vector.load %arg6[%c0_10, %c0_11] : memref<128x128xbf16, #tpu.memory_space<vmem>>, vector<128x128xbf16>
    %c0_12 = arith.constant 0 : index
    %c0_13 = arith.constant 0 : index
    %16 = vector.load %arg7[%c0_12, %c0_13] : memref<1x128xf32, #tpu.memory_space<vmem>>, vector<1x128xf32>
    %cst_14 = arith.constant dense<0.000000e+00> : vector<16x128xf32>
    %17 = tpu.matmul %14, %15, %cst_14 {dimension_numbers = #tpu.dot_dimension_numbers<[1], [0], [0], [1], [0, 0, 1, 1], [], []>} : vector<16x128xbf16>, vector<128x128xbf16>, vector<16x128xf32> -> vector<16x128xf32>
    %18 = vector.broadcast %16 : vector<1x128xf32> to vector<16x128xf32>
    %19 = arith.addf %17, %18 : vector<16x128xf32>
    %c0_15 = arith.constant 0 : index
    %c0_16 = arith.constant 0 : index
    %20 = vector.load %arg8[%c0_15, %c0_16] : memref<16x128xf32, #tpu.memory_space<vmem>>, vector<16x128xf32>
    tpu.vector_store %arg8[%c0_15, %c0_16], %19 {strides = array<i32>} : memref<16x128xf32, #tpu.memory_space<vmem>>, vector<16x128xf32>,
    return
  }
  func.func @transform_0(%arg0: i32) -> (i32, i32) {
    %c0_i32 = arith.constant 0 : i32
    %c0_i32_0 = arith.constant 0 : i32
    return %arg0, %c0_i32 : i32, i32
  }
  func.func @transform_1(%arg0: i32) -> (i32, i32) {
    %c0_i32 = arith.constant 0 : i32
    %c0_i32_0 = arith.constant 0 : i32
    %c0_i32_1 = arith.constant 0 : i32
    return %c0_i32, %c0_i32_0 : i32, i32
  }
  func.func @transform_2(%arg0: i32) -> (i32, i32) {
    %c0_i32 = arith.constant 0 : i32
    %c0_i32_0 = arith.constant 0 : i32
    %c0_i32_1 = arith.constant 0 : i32
    return %c0_i32, %c0_i32_0 : i32, i32
  }
  func.func @transform_3(%arg0: i32) -> (i32, i32) {
    %c0_i32 = arith.constant 0 : i32
    %c0_i32_0 = arith.constant 0 : i32
    %c0_i32_1 = arith.constant 0 : i32
    return %c0_i32, %c0_i32_0 : i32, i32
  }
  func.func @transform_4(%arg0: i32) -> (i32, i32) {
    %c0_i32 = arith.constant 0 : i32
    %c0_i32_0 = arith.constant 0 : i32
    %c0_i32_1 = arith.constant 0 : i32
    return %c0_i32, %c0_i32_0 : i32, i32
  }
  func.func @transform_5(%arg0: i32) -> (i32, i32) {
    %c0_i32 = arith.constant 0 : i32
    %c0_i32_0 = arith.constant 0 : i32
    %c0_i32_1 = arith.constant 0 : i32
    return %c0_i32, %c0_i32_0 : i32, i32
  }
  func.func @transform_6(%arg0: i32) -> (i32, i32) {
    %c0_i32 = arith.constant 0 : i32
    %c0_i32_0 = arith.constant 0 : i32
    %c0_i32_1 = arith.constant 0 : i32
    return %c0_i32, %c0_i32_0 : i32, i32
  }
  func.func @transform_7(%arg0: i32) -> (i32, i32) {
    %c0_i32 = arith.constant 0 : i32
    %c0_i32_0 = arith.constant 0 : i32
    return %arg0, %c0_i32 : i32, i32
  }
}

module attributes {stable_mosaic.version = 11 : i64} {
  func.func @_fused_mlp_kernel(%arg0: i32, %arg1: memref<16x32xbf16, #tpu.memory_space<vmem>>, %arg2: memref<32x128xbf16, #tpu.memory_space<vmem>>, %arg3: memref<1x128xf32, #tpu.memory_space<vmem>>, %arg4: memref<128x128xbf16, #tpu.memory_space<vmem>>, %arg5: memref<1x128xf32, #tpu.memory_space<vmem>>, %arg6: memref<128x128xbf16, #tpu.memory_space<vmem>>, %arg7: memref<1x128xf32, #tpu.memory_space<vmem>>, %arg8: memref<16x128xf32, #tpu.memory_space<vmem>>) attributes {dimension_semantics = [#tpu.dimension_semantics<parallel>], iteration_bounds = array<i64: 1>, scalar_prefetch = 0 : i64, scratch_operands = 0 : i64, tpu.core_type = #tpu.core_type<tc>, window_params = [{transform_indices = @transform_0, window_bounds = array<i64: 16, 32>}, {pipeline_mode = #tpu.pipeline_mode<synchronous>, transform_indices = @transform_1, window_bounds = array<i64: 32, 128>}, {pipeline_mode = #tpu.pipeline_mode<synchronous>, transform_indices = @transform_2, window_bounds = array<i64: 1, 128>}, {pipeline_mode = #tpu.pipeline_mode<synchronous>, transform_indices = @transform_3, window_bounds = array<i64: 128, 128>}, {pipeline_mode = #tpu.pipeline_mode<synchronous>, transform_indices = @transform_4, window_bounds = array<i64: 1, 128>}, {pipeline_mode = #tpu.pipeline_mode<synchronous>, transform_indices = @transform_5, window_bounds = array<i64: 128, 128>}, {pipeline_mode = #tpu.pipeline_mode<synchronous>, transform_indices = @transform_6, window_bounds = array<i64: 1, 128>}, {transform_indices = @transform_7, window_bounds = array<i64: 16, 128>}]} {
    %c0 = arith.constant 0 : index
    %c0_0 = arith.constant 0 : index
    %0 = vector.load %arg1[%c0, %c0_0] : memref<16x32xbf16, #tpu.memory_space<vmem>>, vector<16x32xbf16>
    %c0_1 = arith.constant 0 : index
    %c0_2 = arith.constant 0 : index
    %1 = vector.load %arg2[%c0_1, %c0_2] : memref<32x128xbf16, #tpu.memory_space<vmem>>, vector<32x128xbf16>
    %c0_3 = arith.constant 0 : index
    %c0_4 = arith.constant 0 : index
    %2 = vector.load %arg3[%c0_3, %c0_4] : memref<1x128xf32, #tpu.memory_space<vmem>>, vector<1x128xf32>
    %cst = arith.constant dense<0.000000e+00> : vector<16x128xf32>
    %3 = tpu.matmul %0, %1, %cst {dimension_numbers = #tpu.dot_dimension_numbers<[1], [0], [0], [1], [0, 0, 1, 1], [], []>} : vector<16x32xbf16>, vector<32x128xbf16>, vector<16x128xf32> -> vector<16x128xf32>
    %4 = vector.broadcast %2 : vector<1x128xf32> to vector<16x128xf32>
    %5 = arith.addf %3, %4 : vector<16x128xf32>
    %6 = math.tanh %5 : vector<16x128xf32>
    %7 = arith.truncf %6 : vector<16x128xf32> to vector<16x128xbf16>
    %c0_5 = arith.constant 0 : index
    %c0_6 = arith.constant 0 : index
    %8 = vector.load %arg4[%c0_5, %c0_6] : memref<128x128xbf16, #tpu.memory_space<vmem>>, vector<128x128xbf16>
    %c0_7 = arith.constant 0 : index
    %c0_8 = arith.constant 0 : index
    %9 = vector.load %arg5[%c0_7, %c0_8] : memref<1x128xf32, #tpu.memory_space<vmem>>, vector<1x128xf32>
    %cst_9 = arith.constant dense<0.000000e+00> : vector<16x128xf32>
    %10 = tpu.matmul %7, %8, %cst_9 {dimension_numbers = #tpu.dot_dimension_numbers<[1], [0], [0], [1], [0, 0, 1, 1], [], []>} : vector<16x128xbf16>, vector<128x128xbf16>, vector<16x128xf32> -> vector<16x128xf32>
    %11 = vector.broadcast %9 : vector<1x128xf32> to vector<16x128xf32>
    %12 = arith.addf %10, %11 : vector<16x128xf32>
    %13 = math.tanh %12 : vector<16x128xf32>
    %14 = arith.truncf %13 : vector<16x128xf32> to vector<16x128xbf16>
    %c0_10 = arith.constant 0 : index
    %c0_11 = arith.constant 0 : index
    %15 = vector.load %arg6[%c0_10, %c0_11] : memref<128x128xbf16, #tpu.memory_space<vmem>>, vector<128x128xbf16>
    %c0_12 = arith.constant 0 : index
    %c0_13 = arith.constant 0 : index
    %16 = vector.load %arg7[%c0_12, %c0_13] : memref<1x128xf32, #tpu.memory_space<vmem>>, vector<1x128xf32>
    %cst_14 = arith.constant dense<0.000000e+00> : vector<16x128xf32>
    %17 = tpu.matmul %14, %15, %cst_14 {dimension_numbers = #tpu.dot_dimension_numbers<[1], [0], [0], [1], [0, 0, 1, 1], [], []>} : vector<16x128xbf16>, vector<128x128xbf16>, vector<16x128xf32> -> vector<16x128xf32>
    %18 = vector.broadcast %16 : vector<1x128xf32> to vector<16x128xf32>
    %19 = arith.addf %17, %18 : vector<16x128xf32>
    %c0_15 = arith.constant 0 : index
    %c0_16 = arith.constant 0 : index
    %20 = vector.load %arg8[%c0_15, %c0_16] : memref<16x128xf32, #tpu.memory_space<vmem>>, vector<16x128xf32>
    tpu.vector_store %arg8[%c0_15, %c0_16], %19 {strides = array<i32>} : memref<16x128xf32, #tpu.memory_space<vmem>>, vector<16x128xf32>,
    return
  }
  func.func @transform_0(%arg0: i32) -> (i32, i32) {
    %c0_i32 = arith.constant 0 : i32
    %c0_i32_0 = arith.constant 0 : i32
    return %arg0, %c0_i32 : i32, i32
  }
  func.func @transform_1(%arg0: i32) -> (i32, i32) {
    %c0_i32 = arith.constant 0 : i32
    %c0_i32_0 = arith.constant 0 : i32
    %c0_i32_1 = arith.constant 0 : i32
    return %c0_i32, %c0_i32_0 : i32, i32
  }
  func.func @transform_2(%arg0: i32) -> (i32, i32) {
    %c0_i32 = arith.constant 0 : i32
    %c0_i32_0 = arith.constant 0 : i32
    %c0_i32_1 = arith.constant 0 : i32
    return %c0_i32, %c0_i32_0 : i32, i32
  }
  func.func @transform_3(%arg0: i32) -> (i32, i32) {
    %c0_i32 = arith.constant 0 : i32
    %c0_i32_0 = arith.constant 0 : i32
    %c0_i32_1 = arith.constant 0 : i32
    return %c0_i32, %c0_i32_0 : i32, i32
  }
  func.func @transform_4(%arg0: i32) -> (i32, i32) {
    %c0_i32 = arith.constant 0 : i32
    %c0_i32_0 = arith.constant 0 : i32
    %c0_i32_1 = arith.constant 0 : i32
    return %c0_i32, %c0_i32_0 : i32, i32
  }
  func.func @transform_5(%arg0: i32) -> (i32, i32) {
    %c0_i32 = arith.constant 0 : i32
    %c0_i32_0 = arith.constant 0 : i32
    %c0_i32_1 = arith.constant 0 : i32
    return %c0_i32, %c0_i32_0 : i32, i32
  }
  func.func @transform_6(%arg0: i32) -> (i32, i32) {
    %c0_i32 = arith.constant 0 : i32
    %c0_i32_0 = arith.constant 0 : i32
    %c0_i32_1 = arith.constant 0 : i32
    return %c0_i32, %c0_i32_0 : i32, i32
  }
  func.func @transform_7(%arg0: i32) -> (i32, i32) {
    %c0_i32 = arith.constant 0 : i32
    %c0_i32_0 = arith.constant 0 : i32
    return %arg0, %c0_i32 : i32, i32
  }
}

</mosaic_0001>

<llo_original>
// kernel: tpu_custom_call.1
$region0: #{tpu_custom_call.1}
  #allocation0 [shape = 'u32[]', space=smem, size = 0x4, offset = 0x4, fixed_abs, tag = 'smem constant byte address 0x4 - core index']
  #allocation1 [shape = 'u32[144,128]{1,0:T(1,128)}', space=vmem, size = 0x12000, scoped, tag = 'internal scratch']
  %s0 = inlined_call_operand.hbm [shape: bf16[16,32], index: 0, kind: input, shape index: {}]
  %s1 = inlined_call_operand.hbm [shape: bf16[32,128], index: 1, kind: input, shape index: {}]
  %s2 = inlined_call_operand.vmem [shape: f32[1,128], index: 2, kind: input, shape index: {}]
  %s3 = inlined_call_operand.hbm [shape: bf16[128,128], index: 3, kind: input, shape index: {}]
  %s4 = inlined_call_operand.vmem [shape: f32[1,128], index: 4, kind: input, shape index: {}]
  %s5 = inlined_call_operand.hbm [shape: bf16[128,128], index: 5, kind: input, shape index: {}]
  %s6 = inlined_call_operand.vmem [shape: f32[1,128], index: 6, kind: input, shape index: {}]
  %s7 = inlined_call_operand.hbm [shape: f32[16,128], index: 7, kind: output, shape index: {}]
  %s8 = sld [smem:[#allocation0]]
  $region54: #{tpu_custom_call.1} parent=0
    _
  %s10 = ssub.s32 1, %s8
  %s11 = scalar_select 0, %s10, %s8
  $region1: #{tpu_custom_call.1} parent=0
    #allocation2 [shape = 'u8[4096]{0}', space=vmem, size = 0x1000, scoped, tag = 'input window, operand 0, single buffered']
    #allocation3 [shape = 's32[1]{0}', space=sflag, size = 0x4, scoped, tag = 'scoped memory for tpu_custom_call.1']
    #allocation4 [shape = 's32[1]{0}', space=sflag, size = 0x4, scoped, tag = 'scoped memory for tpu_custom_call.1']
    #allocation5 [shape = 'u8[8192]{0}', space=vmem, size = 0x2000, scoped, tag = 'input window, operand 1, single buffered']
    #allocation6 [shape = 's32[1]{0}', space=sflag, size = 0x4, scoped, tag = 'scoped memory for tpu_custom_call.1']
    #allocation7 [shape = 'u8[32768]{0}', space=vmem, size = 0x8000, scoped, tag = 'input window, operand 3, single buffered']
    #allocation8 [shape = 'u8[32768]{0}', space=vmem, size = 0x8000, scoped, tag = 'input window, operand 5, single buffered']
    #allocation9 [shape = 's32[1]{0}', space=sflag, size = 0x4, scoped, tag = 'scoped memory for tpu_custom_call.1']
    #allocation10 [shape = 'u8[8192]{0}', space=vmem, size = 0x2000, scoped, tag = 'output window, operand 0, single buffered']
    %12 = vsyncpa [#allocation3], 0
    %13 = vsyncpa [#allocation6], 0
    %14 = vsyncpa [#allocation9], 0
    %15 = vsyncpa [#allocation4], 0
    // Predicated region
    $region2: #{tpu_custom_call.1} parent=1 // pred_check
      _
    $region3: #{tpu_custom_call.1} parent=1 // pred_check_branch
      %17 = sbr.rel (0) target = $region5
    $region4: #{tpu_custom_call.1} parent=1 // pred_region
      %s19 = ssub.s32 128, 128
      %20 = vsyncadd [#allocation3], %s19
      %s21 = sshll.u32 [#allocation2], 4
      %s22 = int_to_ptr.vmem [resolvable:$true] %s21
      %27 = dma.hbm_to_vmem [thread:$0]  %s0, 128, %s22, [#allocation3], 64, 64, 4
    $region5: #{tpu_custom_call.1} parent=1 // pred_fallthru
      _
    // Predicated region
    $region6: #{tpu_custom_call.1} parent=1 // pred_check
      _
    $region7: #{tpu_custom_call.1} parent=1 // pred_check_branch
      %29 = sbr.rel (0) target = $region9
    $region8: #{tpu_custom_call.1} parent=1 // pred_region
      %s31 = ssub.s32 256, 256
      %32 = vsyncadd [#allocation6], %s31
      %s33 = sshll.u32 [#allocation5], 4
      %s34 = int_to_ptr.vmem [resolvable:$true] %s33
      %39 = dma.hbm_to_vmem [thread:$0]  %s1, 256, %s34, [#allocation6], 64, 64, 4
    $region9: #{tpu_custom_call.1} parent=1 // pred_fallthru
      _
    // Predicated region
    $region10: #{tpu_custom_call.1} parent=1 // pred_check
      _
    $region11: #{tpu_custom_call.1} parent=1 // pred_check_branch
      %41 = sbr.rel (0) target = $region13
    $region12: #{tpu_custom_call.1} parent=1 // pred_region
      _
    $region13: #{tpu_custom_call.1} parent=1 // pred_fallthru
      _
    // Predicated region
    $region14: #{tpu_custom_call.1} parent=1 // pred_check
      _
    $region15: #{tpu_custom_call.1} parent=1 // pred_check_branch
      %43 = sbr.rel (0) target = $region17
    $region16: #{tpu_custom_call.1} parent=1 // pred_region
      %s45 = ssub.s32 1024, 1024
      %46 = vsyncadd [#allocation6], %s45
      %s47 = sshll.u32 [#allocation7], 4
      %s48 = int_to_ptr.vmem [resolvable:$true] %s47
      %53 = dma.hbm_to_vmem [thread:$0]  %s3, 1024, %s48, [#allocation6], 64, 64, 4
    $region17: #{tpu_custom_call.1} parent=1 // pred_fallthru
      _
    // Predicated region
    $region18: #{tpu_custom_call.1} parent=1 // pred_check
      _
    $region19: #{tpu_custom_call.1} parent=1 // pred_check_branch
      %55 = sbr.rel (0) target = $region21
    $region20: #{tpu_custom_call.1} parent=1 // pred_region
      _
    $region21: #{tpu_custom_call.1} parent=1 // pred_fallthru
      _
    // Predicated region
    $region22: #{tpu_custom_call.1} parent=1 // pred_check
      _
    $region23: #{tpu_custom_call.1} parent=1 // pred_check_branch
      %57 = sbr.rel (0) target = $region25
    $region24: #{tpu_custom_call.1} parent=1 // pred_region
      %s59 = ssub.s32 1024, 1024
      %60 = vsyncadd [#allocation9], %s59
      %s61 = sshll.u32 [#allocation8], 4
      %s62 = int_to_ptr.vmem [resolvable:$true] %s61
      %67 = dma.hbm_to_vmem [thread:$0]  %s5, 1024, %s62, [#allocation9], 64, 64, 4
    $region25: #{tpu_custom_call.1} parent=1 // pred_fallthru
      _
    // Predicated region
    $region26: #{tpu_custom_call.1} parent=1 // pred_check
      _
    $region27: #{tpu_custom_call.1} parent=1 // pred_check_branch
      %69 = sbr.rel (0) target = $region29
    $region28: #{tpu_custom_call.1} parent=1 // pred_region
      _
    $region29: #{tpu_custom_call.1} parent=1 // pred_fallthru
      _
    // Predicated region
    $region30: #{tpu_custom_call.1} parent=1 // pred_check
      _
    $region31: #{tpu_custom_call.1} parent=1 // pred_check_branch
      %71 = sbr.rel (0) target = $region33
    $region32: #{tpu_custom_call.1} parent=1 // pred_region
      %72 = dma.done [#allocation3], 128
    $region33: #{tpu_custom_call.1} parent=1 // pred_fallthru
      _
    // Predicated region
    $region34: #{tpu_custom_call.1} parent=1 // pred_check
      _
    $region35: #{tpu_custom_call.1} parent=1 // pred_check_branch
      %74 = sbr.rel (0) target = $region37
    $region36: #{tpu_custom_call.1} parent=1 // pred_region
      %75 = dma.done [#allocation6], 256
    $region37: #{tpu_custom_call.1} parent=1 // pred_fallthru
      _
    // Predicated region
    $region38: #{tpu_custom_call.1} parent=1 // pred_check
      _
    $region39: #{tpu_custom_call.1} parent=1 // pred_check_branch
      %77 = sbr.rel (0) target = $region41
    $region40: #{tpu_custom_call.1} parent=1 // pred_region
      %78 = dma.done [#allocation6], 1024
    $region41: #{tpu_custom_call.1} parent=1 // pred_fallthru
      _
    // Predicated region
    $region42: #{tpu_custom_call.1} parent=1 // pred_check
      _
    $region43: #{tpu_custom_call.1} parent=1 // pred_check_branch
      %80 = sbr.rel (0) target = $region45
    $region44: #{tpu_custom_call.1} parent=1 // pred_region
      %81 = dma.done [#allocation9], 1024
    $region45: #{tpu_custom_call.1} parent=1 // pred_fallthru
      _
    %v83 = vld [vmem:[#allocation2] sm:$0xf]
    %v84 = vld [vmem:[#allocation2 + $0x4] sm:$0xf]
    %v85 = vld [vmem:[#allocation5] sm:$0xf]
    %v86 = vld [vmem:[#allocation5 + $0x4] sm:$0xf]
    %v87 = vld [vmem:[#allocation5 + $0x8] sm:$0xf]
    %v88 = vld [vmem:[#allocation5 + $0xc] sm:$0xf]
    %v89 = vld [vmem:[%s2] sm:$0x1]
    %v91 = vlaneseq
    %v92 = vshrl.u32 %v91, 7
    %v93 = vsub.s32 0, %v92
    %v94 = vrot.slane %v89, %v93
    %v98 = vunpack.c.l.b16 %v83
    %v99 = vunpack.c.l.b16 %v84
    %v100 = vpack.c.b16 %v99, %v98
    %v105 = vunpack.c.l.b16 %v85
    %v106 = vunpack.c.l.b16 %v86
    %v107 = vunpack.c.l.b16 %v87
    %v108 = vunpack.c.l.b16 %v88
    %v109 = vpack.c.b16 %v106, %v105
    %v110 = vpack.c.b16 %v108, %v107
    %vm113 = vcmask 261120
    %v115 = vsel %vm113, %v100, 0
    %117 = vmatprep.subr.bf16.mxu0 0
    %118 = vmatpush1.bf16.msra.mxu0 0
    %119 = vmatprep.subr.bf16.mxu0 0
    %120 = vmatpush1.bf16.msra.mxu0 0
    %121 = vmatprep.subr.bf16.mxu0 0
    %122 = vmatpush1.bf16.msra.mxu0 0
    %123 = vmatprep.subr.bf16.mxu0 0
    %124 = vmatpush1.bf16.msra.mxu0 0
    %125 = vmatprep.subr.bf16.mxu0 0
    %126 = vmatpush1.bf16.msra.mxu0 0
    %127 = vmatprep.subr.bf16.mxu0 0
    %128 = vmatpush1.bf16.msra.mxu0 0
    %129 = vmatprep.subr.bf16.mxu0 0
    %130 = vmatpush1.bf16.msra.mxu0 %v110
    %131 = vmatprep.subr.bf16.mxu0 0
    %132 = vmatpush1.bf16.msra.mxu0 %v109
    %133 = vmatprep.subr.bf16.mxu0 0
    %134 = vmatpush2.bf16.msra.mxu0 0
    %135 = vmatprep.subr.bf16.mxu0 0
    %136 = vmatpush2.bf16.msra.mxu0 0
    %137 = vmatprep.subr.bf16.mxu0 0
    %138 = vmatpush2.bf16.msra.mxu0 0
    %139 = vmatprep.subr.bf16.mxu0 0
    %140 = vmatpush2.bf16.msra.mxu0 0
    %141 = vmatprep.subr.bf16.mxu0 0
    %142 = vmatpush2.bf16.msra.mxu0 0
    %143 = vmatprep.subr.bf16.mxu0 0
    %144 = vmatpush2.bf16.msra.mxu0 0
    %145 = vmatprep.subr.bf16.mxu0 0
    %146 = vmatpush2.bf16.msra.mxu0 0
    %147 = vmatprep.subr.bf16.mxu0 0
    %148 = vmatpush2.bf16.msra.mxu0 0
    %149 = vmatprep.mubr.bf16.mxu0 0
    %150 = vmatmul.mubr.bf16.gmra.mxu0 %v115
    %v151 = vpop.f32.mrf.mxu0
    %v152 = vadd.f32 %v94, %v151
    %v153 = vpop.f32.mrf.mxu0
    %v154 = vpop.f32.mrf.mxu0
    %v155 = vadd.f32 %v94, %v154
    %v156 = vpop.f32.mrf.mxu0
    %157 = vdwg.mxu0
    %v158 = vtanh.pop %v152
    %v159 = vtanh.pop %v155
    %v160 = vpack.c.bf16 %v159, %v158
    %v161 = vld [vmem:[#allocation7] sm:$0xf]
    %v162 = vld [vmem:[#allocation7 + $0x4] sm:$0xf]
    %v163 = vld [vmem:[#allocation7 + $0x8] sm:$0xf]
    %v164 = vld [vmem:[#allocation7 + $0xc] sm:$0xf]
    %v165 = vld [vmem:[#allocation7 + $0x10] sm:$0xf]
    %v166 = vld [vmem:[#allocation7 + $0x14] sm:$0xf]
    %v167 = vld [vmem:[#allocation7 + $0x18] sm:$0xf]
    %v168 = vld [vmem:[#allocation7 + $0x1c] sm:$0xf]
    %v169 = vld [vmem:[#allocation7 + $0x20] sm:$0xf]
    %v170 = vld [vmem:[#allocation7 + $0x24] sm:$0xf]
    %v171 = vld [vmem:[#allocation7 + $0x28] sm:$0xf]
    %v172 = vld [vmem:[#allocation7 + $0x2c] sm:$0xf]
    %v173 = vld [vmem:[#allocation7 + $0x30] sm:$0xf]
    %v174 = vld [vmem:[#allocation7 + $0x34] sm:$0xf]
    %v175 = vld [vmem:[#allocation7 + $0x38] sm:$0xf]
    %v176 = vld [vmem:[#allocation7 + $0x3c] sm:$0xf]
    %v177 = vld [vmem:[%s4] sm:$0x1]
    %v179 = vlaneseq
    %v180 = vshrl.u32 %v179, 7
    %v181 = vsub.s32 0, %v180
    %v182 = vrot.slane %v177, %v181
    %v200 = vunpack.c.l.b16 %v161
    %v201 = vunpack.c.l.b16 %v162
    %v202 = vunpack.c.l.b16 %v163
    %v203 = vunpack.c.l.b16 %v164
    %v204 = vunpack.c.l.b16 %v165
    %v205 = vunpack.c.l.b16 %v166
    %v206 = vunpack.c.l.b16 %v167
    %v207 = vunpack.c.l.b16 %v168
    %v208 = vunpack.c.l.b16 %v169
    %v209 = vunpack.c.l.b16 %v170
    %v210 = vunpack.c.l.b16 %v171
    %v211 = vunpack.c.l.b16 %v172
    %v212 = vunpack.c.l.b16 %v173
    %v213 = vunpack.c.l.b16 %v174
    %v214 = vunpack.c.l.b16 %v175
    %v215 = vunpack.c.l.b16 %v176
    %v216 = vpack.c.b16 %v201, %v200
    %v217 = vpack.c.b16 %v203, %v202
    %v218 = vpack.c.b16 %v205, %v204
    %v219 = vpack.c.b16 %v207, %v206
    %v220 = vpack.c.b16 %v209, %v208
    %v221 = vpack.c.b16 %v211, %v210
    %v222 = vpack.c.b16 %v213, %v212
    %v223 = vpack.c.b16 %v215, %v214
    %232 = vmatprep.subr.bf16.mxu0 0
    %233 = vmatpush1.bf16.msra.mxu0 %v223
    %234 = vmatprep.subr.bf16.mxu0 0
    %235 = vmatpush1.bf16.msra.mxu0 %v222
    %236 = vmatprep.subr.bf16.mxu0 0
    %237 = vmatpush1.bf16.msra.mxu0 %v221
    %238 = vmatprep.subr.bf16.mxu0 0
    %239 = vmatpush1.bf16.msra.mxu0 %v220
    %240 = vmatprep.subr.bf16.mxu0 0
    %241 = vmatpush1.bf16.msra.mxu0 %v219
    %242 = vmatprep.subr.bf16.mxu0 0
    %243 = vmatpush1.bf16.msra.mxu0 %v218
    %244 = vmatprep.subr.bf16.mxu0 0
    %245 = vmatpush1.bf16.msra.mxu0 %v217
    %246 = vmatprep.subr.bf16.mxu0 0
    %247 = vmatpush1.bf16.msra.mxu0 %v216
    %248 = vmatprep.subr.bf16.mxu0 0
    %249 = vmatpush2.bf16.msra.mxu0 0
    %250 = vmatprep.subr.bf16.mxu0 0
    %251 = vmatpush2.bf16.msra.mxu0 0
    %252 = vmatprep.subr.bf16.mxu0 0
    %253 = vmatpush2.bf16.msra.mxu0 0
    %254 = vmatprep.subr.bf16.mxu0 0
    %255 = vmatpush2.bf16.msra.mxu0 0
    %256 = vmatprep.subr.bf16.mxu0 0
    %257 = vmatpush2.bf16.msra.mxu0 0
    %258 = vmatprep.subr.bf16.mxu0 0
    %259 = vmatpush2.bf16.msra.mxu0 0
    %260 = vmatprep.subr.bf16.mxu0 0
    %261 = vmatpush2.bf16.msra.mxu0 0
    %262 = vmatprep.subr.bf16.mxu0 0
    %263 = vmatpush2.bf16.msra.mxu0 0
    %264 = vmatprep.mubr.bf16.mxu0 0
    %265 = vmatmul.mubr.bf16.gmra.mxu0 %v160
    %v266 = vpop.f32.mrf.mxu0
    %v267 = vadd.f32 %v182, %v266
    %v268 = vpop.f32.mrf.mxu0
    %v269 = vpop.f32.mrf.mxu0
    %v270 = vadd.f32 %v182, %v269
    %v271 = vpop.f32.mrf.mxu0
    %272 = vdwg.mxu0
    %v273 = vtanh.pop %v267
    %v274 = vtanh.pop %v270
    %v275 = vpack.c.bf16 %v274, %v273
    %v276 = vld [vmem:[#allocation8] sm:$0xf]
    %v277 = vld [vmem:[#allocation8 + $0x4] sm:$0xf]
    %v278 = vld [vmem:[#allocation8 + $0x8] sm:$0xf]
    %v279 = vld [vmem:[#allocation8 + $0xc] sm:$0xf]
    %v280 = vld [vmem:[#allocation8 + $0x10] sm:$0xf]
    %v281 = vld [vmem:[#allocation8 + $0x14] sm:$0xf]
    %v282 = vld [vmem:[#allocation8 + $0x18] sm:$0xf]
    %v283 = vld [vmem:[#allocation8 + $0x1c] sm:$0xf]
    %v284 = vld [vmem:[#allocation8 + $0x20] sm:$0xf]
    %v285 = vld [vmem:[#allocation8 + $0x24] sm:$0xf]
    %v286 = vld [vmem:[#allocation8 + $0x28] sm:$0xf]
    %v287 = vld [vmem:[#allocation8 + $0x2c] sm:$0xf]
    %v288 = vld [vmem:[#allocation8 + $0x30] sm:$0xf]
    %v289 = vld [vmem:[#allocation8 + $0x34] sm:$0xf]
    %v290 = vld [vmem:[#allocation8 + $0x38] sm:$0xf]
    %v291 = vld [vmem:[#allocation8 + $0x3c] sm:$0xf]
    %v292 = vld [vmem:[%s6] sm:$0x1]
    %v294 = vlaneseq
    %v295 = vshrl.u32 %v294, 7
    %v296 = vsub.s32 0, %v295
    %v297 = vrot.slane %v292, %v296
    %v315 = vunpack.c.l.b16 %v276
    %v316 = vunpack.c.l.b16 %v277
    %v317 = vunpack.c.l.b16 %v278
    %v318 = vunpack.c.l.b16 %v279
    %v319 = vunpack.c.l.b16 %v280
    %v320 = vunpack.c.l.b16 %v281
    %v321 = vunpack.c.l.b16 %v282
    %v322 = vunpack.c.l.b16 %v283
    %v323 = vunpack.c.l.b16 %v284
    %v324 = vunpack.c.l.b16 %v285
    %v325 = vunpack.c.l.b16 %v286
    %v326 = vunpack.c.l.b16 %v287
    %v327 = vunpack.c.l.b16 %v288
    %v328 = vunpack.c.l.b16 %v289
    %v329 = vunpack.c.l.b16 %v290
    %v330 = vunpack.c.l.b16 %v291
    %v331 = vpack.c.b16 %v316, %v315
    %v332 = vpack.c.b16 %v318, %v317
    %v333 = vpack.c.b16 %v320, %v319
    %v334 = vpack.c.b16 %v322, %v321
    %v335 = vpack.c.b16 %v324, %v323
    %v336 = vpack.c.b16 %v326, %v325
    %v337 = vpack.c.b16 %v328, %v327
    %v338 = vpack.c.b16 %v330, %v329
    %347 = vmatprep.subr.bf16.mxu0 0
    %348 = vmatpush1.bf16.msra.mxu0 %v338
    %349 = vmatprep.subr.bf16.mxu0 0
    %350 = vmatpush1.bf16.msra.mxu0 %v337
    %351 = vmatprep.subr.bf16.mxu0 0
    %352 = vmatpush1.bf16.msra.mxu0 %v336
    %353 = vmatprep.subr.bf16.mxu0 0
    %354 = vmatpush1.bf16.msra.mxu0 %v335
    %355 = vmatprep.subr.bf16.mxu0 0
    %356 = vmatpush1.bf16.msra.mxu0 %v334
    %357 = vmatprep.subr.bf16.mxu0 0
    %358 = vmatpush1.bf16.msra.mxu0 %v333
    %359 = vmatprep.subr.bf16.mxu0 0
    %360 = vmatpush1.bf16.msra.mxu0 %v332
    %361 = vmatprep.subr.bf16.mxu0 0
    %362 = vmatpush1.bf16.msra.mxu0 %v331
    %363 = vmatprep.subr.bf16.mxu0 0
    %364 = vmatpush2.bf16.msra.mxu0 0
    %365 = vmatprep.subr.bf16.mxu0 0
    %366 = vmatpush2.bf16.msra.mxu0 0
    %367 = vmatprep.subr.bf16.mxu0 0
    %368 = vmatpush2.bf16.msra.mxu0 0
    %369 = vmatprep.subr.bf16.mxu0 0
    %370 = vmatpush2.bf16.msra.mxu0 0
    %371 = vmatprep.subr.bf16.mxu0 0
    %372 = vmatpush2.bf16.msra.mxu0 0
    %373 = vmatprep.subr.bf16.mxu0 0
    %374 = vmatpush2.bf16.msra.mxu0 0
    %375 = vmatprep.subr.bf16.mxu0 0
    %376 = vmatpush2.bf16.msra.mxu0 0
    %377 = vmatprep.subr.bf16.mxu0 0
    %378 = vmatpush2.bf16.msra.mxu0 0
    %379 = vmatprep.mubr.bf16.mxu0 0
    %380 = vmatmul.mubr.bf16.gmra.mxu0 %v275
    %v381 = vpop.f32.mrf.mxu0
    %v382 = vadd.f32 %v297, %v381
    %v383 = vpop.f32.mrf.mxu0
    %v384 = vpop.f32.mrf.mxu0
    %v385 = vadd.f32 %v297, %v384
    %v386 = vpop.f32.mrf.mxu0
    %387 = vdwg.mxu0
    %388 = vst [vmem:[#allocation10] sm:$0xff] %v382
    %389 = vst [vmem:[#allocation10 + $0x8] sm:$0xff] %v385
    // Predicated region
    $region46: #{tpu_custom_call.1} parent=1 // pred_check
      _
    $region47: #{tpu_custom_call.1} parent=1 // pred_check_branch
      %391 = sbr.rel (0) target = $region49
    $region48: #{tpu_custom_call.1} parent=1 // pred_region
      %s393 = ssub.s32 256, 256
      %394 = vsyncadd [#allocation4], %s393
      %s395 = sshll.u32 [#allocation10], 4
      %s396 = int_to_ptr.vmem [resolvable:$true] %s395
      %401 = dma.vmem_to_hbm [thread:$0]  %s396, 256, %s7, [#allocation4], 128, 128, 8
    $region49: #{tpu_custom_call.1} parent=1 // pred_fallthru
      _
    // Predicated region
    $region50: #{tpu_custom_call.1} parent=1 // pred_check
      _
    $region51: #{tpu_custom_call.1} parent=1 // pred_check_branch
      %403 = sbr.rel (0) target = $region53
    $region52: #{tpu_custom_call.1} parent=1 // pred_region
      %404 = dma.done [#allocation4], 256
    $region53: #{tpu_custom_call.1} parent=1 // pred_fallthru
      _
    %405 = vsyncpa [#allocation3], 1
    %406 = vsyncpa [#allocation6], 1
    %407 = vsyncpa [#allocation9], 1
    %408 = vsyncpa [#allocation4], 1

// kernel: tpu_custom_call.1
$region0: #{tpu_custom_call.1}
  #allocation0 [shape = 'u32[]', space=smem, size = 0x4, offset = 0x4, fixed_abs, tag = 'smem constant byte address 0x4 - core index']
  #allocation1 [shape = 'u32[144,128]{1,0:T(1,128)}', space=vmem, size = 0x12000, scoped, tag = 'internal scratch']
  %s0 = inlined_call_operand.hbm [shape: bf16[16,32], index: 0, kind: input, shape index: {}]
  %s1 = inlined_call_operand.hbm [shape: bf16[32,128], index: 1, kind: input, shape index: {}]
  %s2 = inlined_call_operand.vmem [shape: f32[1,128], index: 2, kind: input, shape index: {}]
  %s3 = inlined_call_operand.hbm [shape: bf16[128,128], index: 3, kind: input, shape index: {}]
  %s4 = inlined_call_operand.vmem [shape: f32[1,128], index: 4, kind: input, shape index: {}]
  %s5 = inlined_call_operand.hbm [shape: bf16[128,128], index: 5, kind: input, shape index: {}]
  %s6 = inlined_call_operand.vmem [shape: f32[1,128], index: 6, kind: input, shape index: {}]
  %s7 = inlined_call_operand.hbm [shape: f32[16,128], index: 7, kind: output, shape index: {}]
  %s8 = sld [smem:[#allocation0]]
  $region54: #{tpu_custom_call.1} parent=0
    _
  %s10 = ssub.s32 1, %s8
  %s11 = scalar_select 0, %s10, %s8
  $region1: #{tpu_custom_call.1} parent=0
    #allocation2 [shape = 'u8[4096]{0}', space=vmem, size = 0x1000, scoped, tag = 'input window, operand 0, single buffered']
    #allocation3 [shape = 's32[1]{0}', space=sflag, size = 0x4, scoped, tag = 'scoped memory for tpu_custom_call.1']
    #allocation4 [shape = 's32[1]{0}', space=sflag, size = 0x4, scoped, tag = 'scoped memory for tpu_custom_call.1']
    #allocation5 [shape = 'u8[8192]{0}', space=vmem, size = 0x2000, scoped, tag = 'input window, operand 1, single buffered']
    #allocation6 [shape = 's32[1]{0}', space=sflag, size = 0x4, scoped, tag = 'scoped memory for tpu_custom_call.1']
    #allocation7 [shape = 'u8[32768]{0}', space=vmem, size = 0x8000, scoped, tag = 'input window, operand 3, single buffered']
    #allocation8 [shape = 'u8[32768]{0}', space=vmem, size = 0x8000, scoped, tag = 'input window, operand 5, single buffered']
    #allocation9 [shape = 's32[1]{0}', space=sflag, size = 0x4, scoped, tag = 'scoped memory for tpu_custom_call.1']
    #allocation10 [shape = 'u8[8192]{0}', space=vmem, size = 0x2000, scoped, tag = 'output window, operand 0, single buffered']
    %12 = vsyncpa [#allocation3], 0
    %13 = vsyncpa [#allocation6], 0
    %14 = vsyncpa [#allocation9], 0
    %15 = vsyncpa [#allocation4], 0
    // Predicated region
    $region2: #{tpu_custom_call.1} parent=1 // pred_check
      _
    $region3: #{tpu_custom_call.1} parent=1 // pred_check_branch
      %17 = sbr.rel (0) target = $region5
    $region4: #{tpu_custom_call.1} parent=1 // pred_region
      %s19 = ssub.s32 128, 128
      %20 = vsyncadd [#allocation3], %s19
      %s21 = sshll.u32 [#allocation2], 4
      %s22 = int_to_ptr.vmem [resolvable:$true] %s21
      %27 = dma.hbm_to_vmem [thread:$0]  %s0, 128, %s22, [#allocation3], 64, 64, 4
    $region5: #{tpu_custom_call.1} parent=1 // pred_fallthru
      _
    // Predicated region
    $region6: #{tpu_custom_call.1} parent=1 // pred_check
      _
    $region7: #{tpu_custom_call.1} parent=1 // pred_check_branch
      %29 = sbr.rel (0) target = $region9
    $region8: #{tpu_custom_call.1} parent=1 // pred_region
      %s31 = ssub.s32 256, 256
      %32 = vsyncadd [#allocation6], %s31
      %s33 = sshll.u32 [#allocation5], 4
      %s34 = int_to_ptr.vmem [resolvable:$true] %s33
      %39 = dma.hbm_to_vmem [thread:$0]  %s1, 256, %s34, [#allocation6], 64, 64, 4
    $region9: #{tpu_custom_call.1} parent=1 // pred_fallthru
      _
    // Predicated region
    $region10: #{tpu_custom_call.1} parent=1 // pred_check
      _
    $region11: #{tpu_custom_call.1} parent=1 // pred_check_branch
      %41 = sbr.rel (0) target = $region13
    $region12: #{tpu_custom_call.1} parent=1 // pred_region
      _
    $region13: #{tpu_custom_call.1} parent=1 // pred_fallthru
      _
    // Predicated region
    $region14: #{tpu_custom_call.1} parent=1 // pred_check
      _
    $region15: #{tpu_custom_call.1} parent=1 // pred_check_branch
      %43 = sbr.rel (0) target = $region17
    $region16: #{tpu_custom_call.1} parent=1 // pred_region
      %s45 = ssub.s32 1024, 1024
      %46 = vsyncadd [#allocation6], %s45
      %s47 = sshll.u32 [#allocation7], 4
      %s48 = int_to_ptr.vmem [resolvable:$true] %s47
      %53 = dma.hbm_to_vmem [thread:$0]  %s3, 1024, %s48, [#allocation6], 64, 64, 4
    $region17: #{tpu_custom_call.1} parent=1 // pred_fallthru
      _
    // Predicated region
    $region18: #{tpu_custom_call.1} parent=1 // pred_check
      _
    $region19: #{tpu_custom_call.1} parent=1 // pred_check_branch
      %55 = sbr.rel (0) target = $region21
    $region20: #{tpu_custom_call.1} parent=1 // pred_region
      _
    $region21: #{tpu_custom_call.1} parent=1 // pred_fallthru
      _
    // Predicated region
    $region22: #{tpu_custom_call.1} parent=1 // pred_check
      _
    $region23: #{tpu_custom_call.1} parent=1 // pred_check_branch
      %57 = sbr.rel (0) target = $region25
    $region24: #{tpu_custom_call.1} parent=1 // pred_region
      %s59 = ssub.s32 1024, 1024
      %60 = vsyncadd [#allocation9], %s59
      %s61 = sshll.u32 [#allocation8], 4
      %s62 = int_to_ptr.vmem [resolvable:$true] %s61
      %67 = dma.hbm_to_vmem [thread:$0]  %s5, 1024, %s62, [#allocation9], 64, 64, 4
    $region25: #{tpu_custom_call.1} parent=1 // pred_fallthru
      _
    // Predicated region
    $region26: #{tpu_custom_call.1} parent=1 // pred_check
      _
    $region27: #{tpu_custom_call.1} parent=1 // pred_check_branch
      %69 = sbr.rel (0) target = $region29
    $region28: #{tpu_custom_call.1} parent=1 // pred_region
      _
    $region29: #{tpu_custom_call.1} parent=1 // pred_fallthru
      _
    // Predicated region
    $region30: #{tpu_custom_call.1} parent=1 // pred_check
      _
    $region31: #{tpu_custom_call.1} parent=1 // pred_check_branch
      %71 = sbr.rel (0) target = $region33
    $region32: #{tpu_custom_call.1} parent=1 // pred_region
      %72 = dma.done [#allocation3], 128
    $region33: #{tpu_custom_call.1} parent=1 // pred_fallthru
      _
    // Predicated region
    $region34: #{tpu_custom_call.1} parent=1 // pred_check
      _
    $region35: #{tpu_custom_call.1} parent=1 // pred_check_branch
      %74 = sbr.rel (0) target = $region37
    $region36: #{tpu_custom_call.1} parent=1 // pred_region
      %75 = dma.done [#allocation6], 256
    $region37: #{tpu_custom_call.1} parent=1 // pred_fallthru
      _
    // Predicated region
    $region38: #{tpu_custom_call.1} parent=1 // pred_check
      _
    $region39: #{tpu_custom_call.1} parent=1 // pred_check_branch
      %77 = sbr.rel (0) target = $region41
    $region40: #{tpu_custom_call.1} parent=1 // pred_region
      %78 = dma.done [#allocation6], 1024
    $region41: #{tpu_custom_call.1} parent=1 // pred_fallthru
      _
    // Predicated region
    $region42: #{tpu_custom_call.1} parent=1 // pred_check
      _
    $region43: #{tpu_custom_call.1} parent=1 // pred_check_branch
      %80 = sbr.rel (0) target = $region45
    $region44: #{tpu_custom_call.1} parent=1 // pred_region
      %81 = dma.done [#allocation9], 1024
    $region45: #{tpu_custom_call.1} parent=1 // pred_fallthru
      _
    %v83 = vld [vmem:[#allocation2] sm:$0xf]
    %v84 = vld [vmem:[#allocation2 + $0x4] sm:$0xf]
    %v85 = vld [vmem:[#allocation5] sm:$0xf]
    %v86 = vld [vmem:[#allocation5 + $0x4] sm:$0xf]
    %v87 = vld [vmem:[#allocation5 + $0x8] sm:$0xf]
    %v88 = vld [vmem:[#allocation5 + $0xc] sm:$0xf]
    %v89 = vld [vmem:[%s2] sm:$0x1]
    %v91 = vlaneseq
    %v92 = vshrl.u32 %v91, 7
    %v93 = vsub.s32 0, %v92
    %v94 = vrot.slane %v89, %v93
    %v98 = vunpack.c.l.b16 %v83
    %v99 = vunpack.c.l.b16 %v84
    %v100 = vpack.c.b16 %v99, %v98
    %v105 = vunpack.c.l.b16 %v85
    %v106 = vunpack.c.l.b16 %v86
    %v107 = vunpack.c.l.b16 %v87
    %v108 = vunpack.c.l.b16 %v88
    %v109 = vpack.c.b16 %v106, %v105
    %v110 = vpack.c.b16 %v108, %v107
    %vm113 = vcmask 261120
    %v115 = vsel %vm113, %v100, 0
    %117 = vmatprep.subr.bf16.mxu0 0
    %118 = vmatpush1.bf16.msra.mxu0 0
    %119 = vmatprep.subr.bf16.mxu0 0
    %120 = vmatpush1.bf16.msra.mxu0 0
    %121 = vmatprep.subr.bf16.mxu0 0
    %122 = vmatpush1.bf16.msra.mxu0 0
    %123 = vmatprep.subr.bf16.mxu0 0
    %124 = vmatpush1.bf16.msra.mxu0 0
    %125 = vmatprep.subr.bf16.mxu0 0
    %126 = vmatpush1.bf16.msra.mxu0 0
    %127 = vmatprep.subr.bf16.mxu0 0
    %128 = vmatpush1.bf16.msra.mxu0 0
    %129 = vmatprep.subr.bf16.mxu0 0
    %130 = vmatpush1.bf16.msra.mxu0 %v110
    %131 = vmatprep.subr.bf16.mxu0 0
    %132 = vmatpush1.bf16.msra.mxu0 %v109
    %133 = vmatprep.subr.bf16.mxu0 0
    %134 = vmatpush2.bf16.msra.mxu0 0
    %135 = vmatprep.subr.bf16.mxu0 0
    %136 = vmatpush2.bf16.msra.mxu0 0
    %137 = vmatprep.subr.bf16.mxu0 0
    %138 = vmatpush2.bf16.msra.mxu0 0
    %139 = vmatprep.subr.bf16.mxu0 0
    %140 = vmatpush2.bf16.msra.mxu0 0
    %141 = vmatprep.subr.bf16.mxu0 0
    %142 = vmatpush2.bf16.msra.mxu0 0
    %143 = vmatprep.subr.bf16.mxu0 0
    %144 = vmatpush2.bf16.msra.mxu0 0
    %145 = vmatprep.subr.bf16.mxu0 0
    %146 = vmatpush2.bf16.msra.mxu0 0
    %147 = vmatprep.subr.bf16.mxu0 0
    %148 = vmatpush2.bf16.msra.mxu0 0
    %149 = vmatprep.mubr.bf16.mxu0 0
    %150 = vmatmul.mubr.bf16.gmra.mxu0 %v115
    %v151 = vpop.f32.mrf.mxu0
    %v152 = vadd.f32 %v94, %v151
    %v153 = vpop.f32.mrf.mxu0
    %v154 = vpop.f32.mrf.mxu0
    %v155 = vadd.f32 %v94, %v154
    %v156 = vpop.f32.mrf.mxu0
    %157 = vdwg.mxu0
    %v158 = vtanh.pop %v152
    %v159 = vtanh.pop %v155
    %v160 = vpack.c.bf16 %v159, %v158
    %v161 = vld [vmem:[#allocation7] sm:$0xf]
    %v162 = vld [vmem:[#allocation7 + $0x4] sm:$0xf]
    %v163 = vld [vmem:[#allocation7 + $0x8] sm:$0xf]
    %v164 = vld [vmem:[#allocation7 + $0xc] sm:$0xf]
    %v165 = vld [vmem:[#allocation7 + $0x10] sm:$0xf]
    %v166 = vld [vmem:[#allocation7 + $0x14] sm:$0xf]
    %v167 = vld [vmem:[#allocation7 + $0x18] sm:$0xf]
    %v168 = vld [vmem:[#allocation7 + $0x1c] sm:$0xf]
    %v169 = vld [vmem:[#allocation7 + $0x20] sm:$0xf]
    %v170 = vld [vmem:[#allocation7 + $0x24] sm:$0xf]
    %v171 = vld [vmem:[#allocation7 + $0x28] sm:$0xf]
    %v172 = vld [vmem:[#allocation7 + $0x2c] sm:$0xf]
    %v173 = vld [vmem:[#allocation7 + $0x30] sm:$0xf]
    %v174 = vld [vmem:[#allocation7 + $0x34] sm:$0xf]
    %v175 = vld [vmem:[#allocation7 + $0x38] sm:$0xf]
    %v176 = vld [vmem:[#allocation7 + $0x3c] sm:$0xf]
    %v177 = vld [vmem:[%s4] sm:$0x1]
    %v179 = vlaneseq
    %v180 = vshrl.u32 %v179, 7
    %v181 = vsub.s32 0, %v180
    %v182 = vrot.slane %v177, %v181
    %v200 = vunpack.c.l.b16 %v161
    %v201 = vunpack.c.l.b16 %v162
    %v202 = vunpack.c.l.b16 %v163
    %v203 = vunpack.c.l.b16 %v164
    %v204 = vunpack.c.l.b16 %v165
    %v205 = vunpack.c.l.b16 %v166
    %v206 = vunpack.c.l.b16 %v167
    %v207 = vunpack.c.l.b16 %v168
    %v208 = vunpack.c.l.b16 %v169
    %v209 = vunpack.c.l.b16 %v170
    %v210 = vunpack.c.l.b16 %v171
    %v211 = vunpack.c.l.b16 %v172
    %v212 = vunpack.c.l.b16 %v173
    %v213 = vunpack.c.l.b16 %v174
    %v214 = vunpack.c.l.b16 %v175
    %v215 = vunpack.c.l.b16 %v176
    %v216 = vpack.c.b16 %v201, %v200
    %v217 = vpack.c.b16 %v203, %v202
    %v218 = vpack.c.b16 %v205, %v204
    %v219 = vpack.c.b16 %v207, %v206
    %v220 = vpack.c.b16 %v209, %v208
    %v221 = vpack.c.b16 %v211, %v210
    %v222 = vpack.c.b16 %v213, %v212
    %v223 = vpack.c.b16 %v215, %v214
    %232 = vmatprep.subr.bf16.mxu0 0
    %233 = vmatpush1.bf16.msra.mxu0 %v223
    %234 = vmatprep.subr.bf16.mxu0 0
    %235 = vmatpush1.bf16.msra.mxu0 %v222
    %236 = vmatprep.subr.bf16.mxu0 0
    %237 = vmatpush1.bf16.msra.mxu0 %v221
    %238 = vmatprep.subr.bf16.mxu0 0
    %239 = vmatpush1.bf16.msra.mxu0 %v220
    %240 = vmatprep.subr.bf16.mxu0 0
    %241 = vmatpush1.bf16.msra.mxu0 %v219
    %242 = vmatprep.subr.bf16.mxu0 0
    %243 = vmatpush1.bf16.msra.mxu0 %v218
    %244 = vmatprep.subr.bf16.mxu0 0
    %245 = vmatpush1.bf16.msra.mxu0 %v217
    %246 = vmatprep.subr.bf16.mxu0 0
    %247 = vmatpush1.bf16.msra.mxu0 %v216
    %248 = vmatprep.subr.bf16.mxu0 0
    %249 = vmatpush2.bf16.msra.mxu0 0
    %250 = vmatprep.subr.bf16.mxu0 0
    %251 = vmatpush2.bf16.msra.mxu0 0
    %252 = vmatprep.subr.bf16.mxu0 0
    %253 = vmatpush2.bf16.msra.mxu0 0
    %254 = vmatprep.subr.bf16.mxu0 0
    %255 = vmatpush2.bf16.msra.mxu0 0
    %256 = vmatprep.subr.bf16.mxu0 0
    %257 = vmatpush2.bf16.msra.mxu0 0
    %258 = vmatprep.subr.bf16.mxu0 0
    %259 = vmatpush2.bf16.msra.mxu0 0
    %260 = vmatprep.subr.bf16.mxu0 0
    %261 = vmatpush2.bf16.msra.mxu0 0
    %262 = vmatprep.subr.bf16.mxu0 0
    %263 = vmatpush2.bf16.msra.mxu0 0
    %264 = vmatprep.mubr.bf16.mxu0 0
    %265 = vmatmul.mubr.bf16.gmra.mxu0 %v160
    %v266 = vpop.f32.mrf.mxu0
    %v267 = vadd.f32 %v182, %v266
    %v268 = vpop.f32.mrf.mxu0
    %v269 = vpop.f32.mrf.mxu0
    %v270 = vadd.f32 %v182, %v269
    %v271 = vpop.f32.mrf.mxu0
    %272 = vdwg.mxu0
    %v273 = vtanh.pop %v267
    %v274 = vtanh.pop %v270
    %v275 = vpack.c.bf16 %v274, %v273
    %v276 = vld [vmem:[#allocation8] sm:$0xf]
    %v277 = vld [vmem:[#allocation8 + $0x4] sm:$0xf]
    %v278 = vld [vmem:[#allocation8 + $0x8] sm:$0xf]
    %v279 = vld [vmem:[#allocation8 + $0xc] sm:$0xf]
    %v280 = vld [vmem:[#allocation8 + $0x10] sm:$0xf]
    %v281 = vld [vmem:[#allocation8 + $0x14] sm:$0xf]
    %v282 = vld [vmem:[#allocation8 + $0x18] sm:$0xf]
    %v283 = vld [vmem:[#allocation8 + $0x1c] sm:$0xf]
    %v284 = vld [vmem:[#allocation8 + $0x20] sm:$0xf]
    %v285 = vld [vmem:[#allocation8 + $0x24] sm:$0xf]
    %v286 = vld [vmem:[#allocation8 + $0x28] sm:$0xf]
    %v287 = vld [vmem:[#allocation8 + $0x2c] sm:$0xf]
    %v288 = vld [vmem:[#allocation8 + $0x30] sm:$0xf]
    %v289 = vld [vmem:[#allocation8 + $0x34] sm:$0xf]
    %v290 = vld [vmem:[#allocation8 + $0x38] sm:$0xf]
    %v291 = vld [vmem:[#allocation8 + $0x3c] sm:$0xf]
    %v292 = vld [vmem:[%s6] sm:$0x1]
    %v294 = vlaneseq
    %v295 = vshrl.u32 %v294, 7
    %v296 = vsub.s32 0, %v295
    %v297 = vrot.slane %v292, %v296
    %v315 = vunpack.c.l.b16 %v276
    %v316 = vunpack.c.l.b16 %v277
    %v317 = vunpack.c.l.b16 %v278
    %v318 = vunpack.c.l.b16 %v279
    %v319 = vunpack.c.l.b16 %v280
    %v320 = vunpack.c.l.b16 %v281
    %v321 = vunpack.c.l.b16 %v282
    %v322 = vunpack.c.l.b16 %v283
    %v323 = vunpack.c.l.b16 %v284
    %v324 = vunpack.c.l.b16 %v285
    %v325 = vunpack.c.l.b16 %v286
    %v326 = vunpack.c.l.b16 %v287
    %v327 = vunpack.c.l.b16 %v288
    %v328 = vunpack.c.l.b16 %v289
    %v329 = vunpack.c.l.b16 %v290
    %v330 = vunpack.c.l.b16 %v291
    %v331 = vpack.c.b16 %v316, %v315
    %v332 = vpack.c.b16 %v318, %v317
    %v333 = vpack.c.b16 %v320, %v319
    %v334 = vpack.c.b16 %v322, %v321
    %v335 = vpack.c.b16 %v324, %v323
    %v336 = vpack.c.b16 %v326, %v325
    %v337 = vpack.c.b16 %v328, %v327
    %v338 = vpack.c.b16 %v330, %v329
    %347 = vmatprep.subr.bf16.mxu0 0
    %348 = vmatpush1.bf16.msra.mxu0 %v338
    %349 = vmatprep.subr.bf16.mxu0 0
    %350 = vmatpush1.bf16.msra.mxu0 %v337
    %351 = vmatprep.subr.bf16.mxu0 0
    %352 = vmatpush1.bf16.msra.mxu0 %v336
    %353 = vmatprep.subr.bf16.mxu0 0
    %354 = vmatpush1.bf16.msra.mxu0 %v335
    %355 = vmatprep.subr.bf16.mxu0 0
    %356 = vmatpush1.bf16.msra.mxu0 %v334
    %357 = vmatprep.subr.bf16.mxu0 0
    %358 = vmatpush1.bf16.msra.mxu0 %v333
    %359 = vmatprep.subr.bf16.mxu0 0
    %360 = vmatpush1.bf16.msra.mxu0 %v332
    %361 = vmatprep.subr.bf16.mxu0 0
    %362 = vmatpush1.bf16.msra.mxu0 %v331
    %363 = vmatprep.subr.bf16.mxu0 0
    %364 = vmatpush2.bf16.msra.mxu0 0
    %365 = vmatprep.subr.bf16.mxu0 0
    %366 = vmatpush2.bf16.msra.mxu0 0
    %367 = vmatprep.subr.bf16.mxu0 0
    %368 = vmatpush2.bf16.msra.mxu0 0
    %369 = vmatprep.subr.bf16.mxu0 0
    %370 = vmatpush2.bf16.msra.mxu0 0
    %371 = vmatprep.subr.bf16.mxu0 0
    %372 = vmatpush2.bf16.msra.mxu0 0
    %373 = vmatprep.subr.bf16.mxu0 0
    %374 = vmatpush2.bf16.msra.mxu0 0
    %375 = vmatprep.subr.bf16.mxu0 0
    %376 = vmatpush2.bf16.msra.mxu0 0
    %377 = vmatprep.subr.bf16.mxu0 0
    %378 = vmatpush2.bf16.msra.mxu0 0
    %379 = vmatprep.mubr.bf16.mxu0 0
    %380 = vmatmul.mubr.bf16.gmra.mxu0 %v275
    %v381 = vpop.f32.mrf.mxu0
    %v382 = vadd.f32 %v297, %v381
    %v383 = vpop.f32.mrf.mxu0
    %v384 = vpop.f32.mrf.mxu0
    %v385 = vadd.f32 %v297, %v384
    %v386 = vpop.f32.mrf.mxu0
    %387 = vdwg.mxu0
    %388 = vst [vmem:[#allocation10] sm:$0xff] %v382
    %389 = vst [vmem:[#allocation10 + $0x8] sm:$0xff] %v385
    // Predicated region
    $region46: #{tpu_custom_call.1} parent=1 // pred_check
      _
    $region47: #{tpu_custom_call.1} parent=1 // pred_check_branch
      %391 = sbr.rel (0) target = $region49
    $region48: #{tpu_custom_call.1} parent=1 // pred_region
      %s393 = ssub.s32 256, 256
      %394 = vsyncadd [#allocation4], %s393
      %s395 = sshll.u32 [#allocation10], 4
      %s396 = int_to_ptr.vmem [resolvable:$true] %s395
      %401 = dma.vmem_to_hbm [thread:$0]  %s396, 256, %s7, [#allocation4], 128, 128, 8
    $region49: #{tpu_custom_call.1} parent=1 // pred_fallthru
      _
    // Predicated region
    $region50: #{tpu_custom_call.1} parent=1 // pred_check
      _
    $region51: #{tpu_custom_call.1} parent=1 // pred_check_branch
      %403 = sbr.rel (0) target = $region53
    $region52: #{tpu_custom_call.1} parent=1 // pred_region
      %404 = dma.done [#allocation4], 256
    $region53: #{tpu_custom_call.1} parent=1 // pred_fallthru
      _
    %405 = vsyncpa [#allocation3], 1
    %406 = vsyncpa [#allocation6], 1
    %407 = vsyncpa [#allocation9], 1
    %408 = vsyncpa [#allocation4], 1

</llo_original>
